<compile_context>
chip_gen: v6e
topology: v6e:2x2x1
jax: 0.10.0
libtpu: 0.0.40
codegen_flags: <defaults>
</compile_context>

<pallas_src>
import functools

import jax
import jax.numpy as jnp
from jax.experimental import pallas as pl
from jax.experimental.pallas import tpu as pltpu


def _vmem_budget():
    """Generation-aware (tile-sizing target, hard vmem_limit cap) in bytes."""
    try:
        cap = int(pltpu.get_tpu_info().vmem_capacity_bytes)
    except Exception:
        cap = 64 << 20                    # conservative default: v7x (64 MiB / TensorCore)
    target = (cap * 5) // 8               # ~40 MiB on v7x, ~80 MiB on v5e/v6e
    limit_cap = max(cap - (8 << 20), 32 << 20)   # headroom for Mosaic-internal scratch
    return target, limit_cap


def _apply_nonlin(y, kind):
    """Elementwise nonlinearity on the f32 matmul result. Kernel-only (uses pl.reciprocal)."""
    if kind == "relu":
        return jnp.maximum(y, 0.0)
    if kind == "tanh":
        return jnp.tanh(y)
    if kind == "elu":
        return jnp.where(y > 0, y, jnp.exp(y) - 1.0)       # PyTorch ELU, alpha=1
    if kind == "silu":
        # exp and approx reciprocal both go to the EUP slot (VPU stays free for cast/store).
        return y * pl.reciprocal(1.0 + jnp.exp(-y), approx=True)
    if kind == "none":
        return y
    raise ValueError(f"unknown nonlinearity: {kind}")


def _matnonlin_kernel(x_ref, wT_ref, b_ref, o_ref, *, nonlinearity):
    # x_ref: (tm, Kin) row tile; wT_ref: (Kin, tn) column block of W^T; b_ref: (1, tn).
    y = jnp.dot(x_ref[...], wT_ref[...], preferred_element_type=jnp.float32)
    y = y + b_ref[...].astype(jnp.float32)
    o_ref[...] = _apply_nonlin(y, nonlinearity).astype(o_ref.dtype)


def _choose_tm(M, bytes_per_row, vmem_budget, sublane):
    """Row-tile size: as large as the VMEM budget allows, but always >=2 grid steps."""
    tm = vmem_budget // max(bytes_per_row, 1)
    tm = min(tm, 32768)                          # sanity cap; the budget usually binds first
    # Prefer >= ~4 grid steps for DMA/compute overlap, but never shrink tiles below
    # 2048 rows just to manufacture steps (per-step overhead ~0.35 us).
    tm = min(tm, max(2048, pl.cdiv(M, 4)))
    # Always >= 2 steps when possible: both v7x TensorCores get work, pipeline can overlap.
    if M >= 2 * sublane:
        tm = min(tm, pl.cdiv(M, 2))
    tm = max(sublane, min(tm, M))
    if tm < M:
        tm = max(sublane, (tm // sublane) * sublane)
    return int(tm)


def matrix_nonlin_layer(x, weight, bias, *, nonlinearity="relu", tm=None, tn=None,
                        weight_dtype=None, out_dtype=None, io_buffers=None):
    """nonlin(x.reshape(B*T, 2C) @ W^T + b).reshape(B, T, C, 2)  (nn.Linear semantics).

    weight_dtype: optional cast of the weight only (e.g. jnp.bfloat16); changes numerics.
    out_dtype:    optional output dtype (defaults to x.dtype); bf16 halves writeback traffic.
    io_buffers:   optional pipeline depth for the x/out streams (sweep 3 if xprof shows
                  exposed DMA at step boundaries).
    """
    batch, time, n_channels, two = x.shape
    assert two == 2
    K = 2 * n_channels
    M = batch * time
    out_dtype = x.dtype if out_dtype is None else jnp.dtype(out_dtype)

    if weight_dtype is not None:
        weight = weight.astype(weight_dtype)   # weight-only cast: negligible HBM traffic
    # nn.Linear computes x @ W^T; transpose once here so the kernel needs no per-step transpose.
    wT = weight.T
    b_row = bias.reshape(1, K)
    x2d = x.reshape(M, K)

    # ---- lane-density fold for K < 128: G rows per matmul row, block-diagonal weight ----
    G = max(1, 128 // K) if K < 128 else 1
    M_pad = M
    if G > 1:
        M_pad = pl.cdiv(M, G) * G
        if M_pad != M:
            x2d = jnp.pad(x2d, ((0, M_pad - M), (0, 0)))
        x2d = x2d.reshape(M_pad // G, G * K)
        wT = jnp.kron(jnp.eye(G, dtype=wT.dtype), wT)      # block-diag (G*K, G*K)
        b_row = jnp.tile(b_row, (1, G))
    Mrows, Kin = x2d.shape
    Kout = wT.shape[1]

    in_itemsize = jnp.dtype(x2d.dtype).itemsize
    w_itemsize = jnp.dtype(wT.dtype).itemsize
    out_itemsize = jnp.dtype(out_dtype).itemsize
    b_itemsize = jnp.dtype(b_row.dtype).itemsize
    sublane = max(8, 32 // min(in_itemsize, out_itemsize))  # 8 f32 / 16 bf16 / 32 int8

    vmem_target, vmem_cap = _vmem_budget()

    # ---- weight column tiling (second grid axis) when the resident (K,K) weight is too big ----
    if tn is None:
        if 2 * Kin * Kout * w_itemsize > vmem_target // 2:
            tn = ((vmem_target // 8) // (2 * Kin * w_itemsize)) // 128 * 128
            tn = min(max(tn, 128), Kout)
        else:
            tn = Kout
    tn = int(tn)
    if tn < Kout:
        tn = max(128, (tn // 128) * 128)
    tn = min(tn, Kout)
    resident = tn == Kout                      # weight/bias index_map constant across the grid

    # ---- row-tile size from the VMEM budget ----
    w_resident_bytes = (1 if resident else 2) * Kin * tn * w_itemsize
    per_row = 2 * Kin * in_itemsize + 2 * tn * out_itemsize + tn * 4   # x + out (dbl-buf) + f32 temp
    budget = max(vmem_target - w_resident_bytes, 8 << 20)
    if tm is None:
        tm = _choose_tm(Mrows, per_row, budget, sublane)
    else:
        tm = min(int(tm), Mrows)
        if tm < Mrows:
            tm = max(sublane, (tm // sublane) * sublane)

    grid = (pl.cdiv(Mrows, tm), pl.cdiv(Kout, tn))   # ragged tails masked by Pallas

    need = (2 * tm * Kin * in_itemsize           # x tiles (double buffered)
            + 2 * tm * tn * out_itemsize         # out tiles (double buffered)
            + tm * tn * 4                        # f32 matmul/nonlin temp (Mosaic internal)
            + w_resident_bytes
            + (1 if resident else 2) * tn * b_itemsize)
    vmem_limit = int(min(max(need * 3 // 2 + (2 << 20), 32 << 20), vmem_cap))

    cost = pl.CostEstimate(
        flops=2 * Mrows * Kin * Kout,
        transcendentals=0 if nonlinearity in ("relu", "none") else Mrows * Kout,
        bytes_accessed=(Mrows * Kin * in_itemsize + Mrows * Kout * out_itemsize
                        + Kin * Kout * w_itemsize + Kout * b_itemsize))

    kernel = functools.partial(_matnonlin_kernel, nonlinearity=nonlinearity)

    def build(single_buffer_resident):
        res_mode = ({"pipeline_mode": pl.Buffered(1)}
                    if (resident and single_buffer_resident) else {})
        io_mode = ({"pipeline_mode": pl.Buffered(int(io_buffers))} if io_buffers else {})
        in_specs = [
            pl.BlockSpec((tm, Kin), lambda i, j: (i, 0), **io_mode),   # x rows (resident over j)
            pl.BlockSpec((Kin, tn), lambda i, j: (0, j), **res_mode),  # W^T column block
            pl.BlockSpec((1, tn), lambda i, j: (0, j), **res_mode),    # bias
        ]
        out_spec = pl.BlockSpec((tm, tn), lambda i, j: (i, j), **io_mode)
        return pl.pallas_call(
            kernel,
            out_shape=jax.ShapeDtypeStruct((Mrows, Kout), out_dtype),
            grid_spec=pltpu.PrefetchScalarGridSpec(
                num_scalar_prefetch=0, grid=grid,
                in_specs=in_specs, out_specs=out_spec),
            compiler_params=pltpu.CompilerParams(
                dimension_semantics=("parallel", "arbitrary"),
                vmem_limit_bytes=vmem_limit),
            cost_estimate=cost,
        )

    try:
        out2d = build(True)(x2d, wT, b_row)
    except Exception:
        # TODO(synk): drop this retry once pl.Buffered(1) on constant-index operands is
        # confirmed across jax versions; it only costs one extra weight/bias buffer.
        out2d = build(False)(x2d, wT, b_row)

    if G > 1:
        out2d = out2d.reshape(M_pad, K)
        if M_pad != M:
            out2d = out2d[:M]
    return out2d.reshape(batch, time, n_channels, 2)


def init_params(n_channels, dtype=jnp.float32):
    """Deterministic init matching MatrixNonlinLayer._initialize_as_identity."""
    K = 2 * n_channels
    weight = jnp.eye(K, dtype=dtype)      # init.eye_
    bias = jnp.zeros((K,), dtype=dtype)   # init.zeros_
    return weight, bias


if __name__ == "__main__":
    key = jax.random.PRNGKey(0)
    k0, k1, k2, k3, k4 = jax.random.split(key, 5)

    def bf16_exact(a):
        # Snap values to the bf16 grid so MXU-pass precision differences vanish in checks.
        return a.astype(jnp.bfloat16).astype(jnp.float32)

    # 1) Identity init (module default), K = 2*64 = 128 lane-dense; small M -> 2 grid steps.
    b1, t1, c1 = 2, 8, 64
    x1 = bf16_exact(jax.random.normal(k0, (b1, t1, c1, 2), jnp.float32))
    w1, bias1 = init_params(c1)
    out1 = jax.block_until_ready(matrix_nonlin_layer(x1, w1, bias1))
    assert out1.shape == x1.shape
    assert jnp.allclose(out1, jnp.maximum(x1, 0.0), atol=1e-5, rtol=1e-5)

    # 2) Random weights, forced multi-tile grid with a ragged last row block (M=300, tm=128).
    b2, t2, c2 = 3, 100, 64
    x2 = bf16_exact(jax.random.normal(k1, (b2, t2, c2, 2), jnp.float32))
    w2 = bf16_exact(0.1 * jax.random.normal(k2, (2 * c2, 2 * c2), jnp.float32))
    bias2 = bf16_exact(0.1 * jax.random.normal(k3, (2 * c2,), jnp.float32))
    out2 = jax.block_until_ready(matrix_nonlin_layer(x2, w2, bias2, tm=128))
    ref2 = jnp.maximum(x2.reshape(b2 * t2, 2 * c2) @ w2.T + bias2, 0.0).reshape(x2.shape)
    assert jnp.allclose(out2, ref2, atol=1e-3, rtol=1e-3)

    # 3) K < 128 lane-density fold (block-diagonal weight) with ragged M (padding path).
    b3, t3, c3 = 2, 9, 16            # K=32, G=4, M=18 -> padded to 20 folded rows of width 128
    x3 = bf16_exact(jax.random.normal(k1, (b3, t3, c3, 2), jnp.float32))
    w3 = bf16_exact(0.1 * jax.random.normal(k2, (2 * c3, 2 * c3), jnp.float32))
    bias3 = bf16_exact(0.1 * jax.random.normal(k3, (2 * c3,), jnp.float32))
    out3 = jax.block_until_ready(matrix_nonlin_layer(x3, w3, bias3))
    ref3 = jnp.maximum(x3.reshape(b3 * t3, 2 * c3) @ w3.T + bias3, 0.0).reshape(x3.shape)
    assert jnp.allclose(out3, ref3, atol=1e-3, rtol=1e-3)

    # 4) Forced weight-column streaming (2-D grid, K=256, tn=128) + silu (EUP approx recip).
    b4, t4, c4 = 2, 40, 128
    x4 = bf16_exact(jax.random.normal(k4, (b4, t4, c4, 2), jnp.float32))
    w4 = bf16_exact(0.05 * jax.random.normal(k2, (2 * c4, 2 * c4), jnp.float32))
    bias4 = bf16_exact(0.05 * jax.random.normal(k3, (2 * c4,), jnp.float32))
    out4 = jax.block_until_ready(
        matrix_nonlin_layer(x4, w4, bias4, nonlinearity="silu", tn=128))
    y4 = x4.reshape(b4 * t4, 2 * c4) @ w4.T + bias4
    ref4 = (y4 * jax.nn.sigmoid(y4)).reshape(x4.shape)
    assert jnp.allclose(out4, ref4, atol=1e-2, rtol=1e-2)

    # 5) bf16 in / bf16 out, identity weights (exercises sublane=16 rounding + bf16 writeback).
    b5, t5, c5 = 4, 256, 64
    x5 = jax.random.normal(k0, (b5, t5, c5, 2), jnp.float32).astype(jnp.bfloat16)
    w5, bias5 = init_params(c5, dtype=jnp.bfloat16)
    out5 = jax.block_until_ready(matrix_nonlin_layer(x5, w5, bias5))
    assert out5.dtype == jnp.bfloat16
    assert jnp.allclose(out5.astype(jnp.float32),
                        jnp.maximum(x5.astype(jnp.float32), 0.0), atol=1e-6, rtol=1e-6)

    print("KERNEL_OK")
</pallas_src>

<mosaic_0001>
module attributes {stable_mosaic.version = 11 : i64} {
  func.func @_matnonlin_kernel(%arg0: i32, %arg1: i32, %arg2: memref<8x128xf32, #tpu.memory_space<vmem>>, %arg3: memref<128x128xf32, #tpu.memory_space<vmem>>, %arg4: memref<1x128xf32, #tpu.memory_space<vmem>>, %arg5: memref<8x128xf32, #tpu.memory_space<vmem>>) attributes {dimension_semantics = [#tpu.dimension_semantics<parallel>, #tpu.dimension_semantics<arbitrary>], iteration_bounds = array<i64: 2, 1>, scalar_prefetch = 0 : i64, scratch_operands = 0 : i64, tpu.core_type = #tpu.core_type<tc>, window_params = [{transform_indices = @transform_0, window_bounds = array<i64: 8, 128>}, {pipeline_mode = #tpu.pipeline_mode<synchronous>, transform_indices = @transform_1, window_bounds = array<i64: 128, 128>}, {pipeline_mode = #tpu.pipeline_mode<synchronous>, transform_indices = @transform_2, window_bounds = array<i64: 1, 128>}, {transform_indices = @transform_3, window_bounds = array<i64: 8, 128>}]} {
    %c0 = arith.constant 0 : index
    %c0_0 = arith.constant 0 : index
    %0 = vector.load %arg2[%c0, %c0_0] : memref<8x128xf32, #tpu.memory_space<vmem>>, vector<8x128xf32>
    %c0_1 = arith.constant 0 : index
    %c0_2 = arith.constant 0 : index
    %1 = vector.load %arg3[%c0_1, %c0_2] : memref<128x128xf32, #tpu.memory_space<vmem>>, vector<128x128xf32>
    %cst = arith.constant dense<0.000000e+00> : vector<8x128xf32>
    %2 = tpu.matmul %0, %1, %cst {dimension_numbers = #tpu.dot_dimension_numbers<[1], [0], [0], [1], [0, 0, 1, 1], [], []>} : vector<8x128xf32>, vector<128x128xf32>, vector<8x128xf32> -> vector<8x128xf32>
    %c0_3 = arith.constant 0 : index
    %c0_4 = arith.constant 0 : index
    %3 = vector.load %arg4[%c0_3, %c0_4] : memref<1x128xf32, #tpu.memory_space<vmem>>, vector<1x128xf32>
    %4 = vector.broadcast %3 : vector<1x128xf32> to vector<8x128xf32>
    %5 = arith.addf %2, %4 : vector<8x128xf32>
    %cst_5 = arith.constant 0.000000e+00 : f32
    %6 = vector.broadcast %cst_5 : f32 to vector<8x128xf32>
    %7 = arith.maximumf %5, %6 : vector<8x128xf32>
    %c0_6 = arith.constant 0 : index
    %c0_7 = arith.constant 0 : index
    %8 = vector.load %arg5[%c0_6, %c0_7] : memref<8x128xf32, #tpu.memory_space<vmem>>, vector<8x128xf32>
    tpu.vector_store %arg5[%c0_6, %c0_7], %7 {strides = array<i32>} : memref<8x128xf32, #tpu.memory_space<vmem>>, vector<8x128xf32>,
    return
  }
  func.func @transform_0(%arg0: i32, %arg1: i32) -> (i32, i32) {
    %c0_i32 = arith.constant 0 : i32
    %c0_i32_0 = arith.constant 0 : i32
    return %arg0, %c0_i32 : i32, i32
  }
  func.func @transform_1(%arg0: i32, %arg1: i32) -> (i32, i32) {
    %c0_i32 = arith.constant 0 : i32
    %c0_i32_0 = arith.constant 0 : i32
    return %c0_i32, %arg1 : i32, i32
  }
  func.func @transform_2(%arg0: i32, %arg1: i32) -> (i32, i32) {
    %c0_i32 = arith.constant 0 : i32
    %c0_i32_0 = arith.constant 0 : i32
    return %c0_i32, %arg1 : i32, i32
  }
  func.func @transform_3(%arg0: i32, %arg1: i32) -> (i32, i32) {
    %c0_i32 = arith.constant 0 : i32
    return %arg0, %arg1 : i32, i32
  }
}

module attributes {stable_mosaic.version = 11 : i64} {
  func.func @_matnonlin_kernel(%arg0: i32, %arg1: i32, %arg2: memref<8x128xf32, #tpu.memory_space<vmem>>, %arg3: memref<128x128xf32, #tpu.memory_space<vmem>>, %arg4: memref<1x128xf32, #tpu.memory_space<vmem>>, %arg5: memref<8x128xf32, #tpu.memory_space<vmem>>) attributes {dimension_semantics = [#tpu.dimension_semantics<parallel>, #tpu.dimension_semantics<arbitrary>], iteration_bounds = array<i64: 2, 1>, scalar_prefetch = 0 : i64, scratch_operands = 0 : i64, tpu.core_type = #tpu.core_type<tc>, window_params = [{transform_indices = @transform_0, window_bounds = array<i64: 8, 128>}, {transform_indices = @transform_1, window_bounds = array<i64: 128, 128>}, {transform_indices = @transform_2, window_bounds = array<i64: 1, 128>}, {transform_indices = @transform_3, window_bounds = array<i64: 8, 128>}]} {
    %c0 = arith.constant 0 : index
    %c0_0 = arith.constant 0 : index
    %0 = vector.load %arg2[%c0, %c0_0] : memref<8x128xf32, #tpu.memory_space<vmem>>, vector<8x128xf32>
    %c0_1 = arith.constant 0 : index
    %c0_2 = arith.constant 0 : index
    %1 = vector.load %arg3[%c0_1, %c0_2] : memref<128x128xf32, #tpu.memory_space<vmem>>, vector<128x128xf32>
    %cst = arith.constant dense<0.000000e+00> : vector<8x128xf32>
    %2 = tpu.matmul %0, %1, %cst {dimension_numbers = #tpu.dot_dimension_numbers<[1], [0], [0], [1], [0, 0, 1, 1], [], []>} : vector<8x128xf32>, vector<128x128xf32>, vector<8x128xf32> -> vector<8x128xf32>
    %c0_3 = arith.constant 0 : index
    %c0_4 = arith.constant 0 : index
    %3 = vector.load %arg4[%c0_3, %c0_4] : memref<1x128xf32, #tpu.memory_space<vmem>>, vector<1x128xf32>
    %4 = vector.broadcast %3 : vector<1x128xf32> to vector<8x128xf32>
    %5 = arith.addf %2, %4 : vector<8x128xf32>
    %cst_5 = arith.constant 0.000000e+00 : f32
    %6 = vector.broadcast %cst_5 : f32 to vector<8x128xf32>
    %7 = arith.maximumf %5, %6 : vector<8x128xf32>
    %c0_6 = arith.constant 0 : index
    %c0_7 = arith.constant 0 : index
    %8 = vector.load %arg5[%c0_6, %c0_7] : memref<8x128xf32, #tpu.memory_space<vmem>>, vector<8x128xf32>
    tpu.vector_store %arg5[%c0_6, %c0_7], %7 {strides = array<i32>} : memref<8x128xf32, #tpu.memory_space<vmem>>, vector<8x128xf32>,
    return
  }
  func.func @transform_0(%arg0: i32, %arg1: i32) -> (i32, i32) {
    %c0_i32 = arith.constant 0 : i32
    %c0_i32_0 = arith.constant 0 : i32
    return %arg0, %c0_i32 : i32, i32
  }
  func.func @transform_1(%arg0: i32, %arg1: i32) -> (i32, i32) {
    %c0_i32 = arith.constant 0 : i32
    %c0_i32_0 = arith.constant 0 : i32
    return %c0_i32, %arg1 : i32, i32
  }
  func.func @transform_2(%arg0: i32, %arg1: i32) -> (i32, i32) {
    %c0_i32 = arith.constant 0 : i32
    %c0_i32_0 = arith.constant 0 : i32
    return %c0_i32, %arg1 : i32, i32
  }
  func.func @transform_3(%arg0: i32, %arg1: i32) -> (i32, i32) {
    %c0_i32 = arith.constant 0 : i32
    return %arg0, %arg1 : i32, i32
  }
}

</mosaic_0001>

<llo_original>
// kernel: tpu_custom_call.1
$region0: #{tpu_custom_call.1}
  #allocation0 [shape = 'u32[]', space=smem, size = 0x4, offset = 0x4, fixed_abs, tag = 'smem constant byte address 0x4 - core index']
  #allocation1 [shape = 'u32[144,128]{1,0:T(1,128)}', space=vmem, size = 0x12000, scoped, tag = 'internal scratch']
  %s0 = inlined_call_operand.hbm [shape: f32[16,128], index: 0, kind: input, shape index: {}]
  %s1 = inlined_call_operand.hbm [shape: f32[128,128], index: 1, kind: input, shape index: {}]
  %s2 = inlined_call_operand.vmem [shape: f32[1,128], index: 2, kind: input, shape index: {}]
  %s3 = inlined_call_operand.hbm [shape: f32[16,128], index: 3, kind: output, shape index: {}]
  %s4 = sld [smem:[#allocation0]]
  $region53: #{tpu_custom_call.1} parent=0
    _
  %s6 = ssub.s32 1, %s4
  %s7 = scalar_select 0, %s6, %s4
  $region1: #{tpu_custom_call.1} parent=0
    #allocation2 [shape = 'u8[8192]{0}', space=vmem, size = 0x2000, scoped, tag = 'input window, operand 0']
    #allocation3 [shape = 's32[2]{0}', space=sflag, size = 0x8, scoped, tag = 'scoped memory for tpu_custom_call.1']
    #allocation4 [shape = 's32[2]{0}', space=sflag, size = 0x8, scoped, tag = 'scoped memory for tpu_custom_call.1']
    #allocation5 [shape = 'u8[65536]{0}', space=vmem, size = 0x10000, scoped, tag = 'input window, operand 1, single buffered']
    #allocation6 [shape = 's32[1]{0}', space=sflag, size = 0x4, scoped, tag = 'scoped memory for tpu_custom_call.1']
    #allocation7 [shape = 'u8[8192]{0}', space=vmem, size = 0x2000, scoped, tag = 'output window, operand 0']
    %8 = vsyncpa [#allocation3], 0
    %s9 = scalar_lea.sflag [#allocation3], 1
    %10 = vsyncpa %s9, 0
    %11 = vsyncpa [#allocation6], 0
    %12 = vsyncpa [#allocation4], 0
    %s13 = scalar_lea.sflag [#allocation4], 1
    %14 = vsyncpa %s13, 0
    loop: start=0, step=1, limit=4
    $region2: #{tpu_custom_call.1} parent=1 // loop_pre_header
      _
    $region3: #{tpu_custom_call.1} parent=1 // loop_header
      %s16 = sphi 0, %s20
      %p17 = scmp.ge.s32.totalorder %s16, 4
      %s23 = sphi 0, %s35
      %s24 = sphi 0, %s31
      %s25 = sphi 0, %s23
      %s26 = sphi 0, %s24
      %s27 = sphi 0, %s25
      %s28 = sphi 0, %s26
      %s38 = sphi 0, %s40
      %s41 = sphi 0, %s38
      %s42 = sphi 0, %s41
      %s58 = sphi 0, %s42
      %s64 = sphi 0, %s66
      %s67 = sphi 0, %s64
      %s68 = sphi 0, %s67
      %s84 = sphi 0, %s68
      %s90 = sphi 0, %s92
      %s93 = sphi 0, %s90
      %s94 = sphi 0, %s93
      %s110 = sphi 0, %s94
      %s118 = sphi 0, %s120
      %s121 = sphi 0, %s118
      %s122 = sphi 0, %s121
      %s138 = sphi 0, %s122
    $region4: #{tpu_custom_call.1} parent=1 // loop_header_branch
      %19 = sbr.rel (%p17) target = $region8
    $region5: #{tpu_custom_call.1} parent=1 // loop_body
      %s21 = ssub.s32 %s16, 1
      %s22 = ssub.s32 %s16, 2
      %s29 = sadd.s32 1, %s24
      %p30 = scmp.ge.s32.totalorder %s29, 1
      %s31 = scalar_select %p30, 0, %s29
      %s32 = sadd.s32 1, %s23
      %s33 = scalar_select %p30, %s32, %s23
      %p34 = scmp.ge.s32.totalorder %s33, 2
      %s35 = scalar_select %p34, 0, %s33
      %s36 = ssub.s32 %s23, %s35
      %p37 = scmp.eq.s32.totalorder %s36, 0
      %s39 = sadd.s32 %s38, 1
      %s40 = scalar_select %p37, %s38, %s39
      %p43 = pneg %p37
      %p44 = scmp.eq.s32.totalorder %s16, 1
      %p45 = por %p43, %p44
      %p46 = scmp.ne.s32.totalorder %s38, %s41
      %p47 = scmp.eq.s32.totalorder %s16, 0
      %p48 = por %p46, %p47
      %p49 = scmp.ne.s32.totalorder %s38, %s41
      %p50 = scmp.eq.s32.totalorder %s21, 1
      %p51 = por %p49, %p50
      %p52 = scmp.ne.s32.totalorder %s41, %s42
      %p53 = scmp.eq.s32.totalorder %s21, 0
      %p54 = por %p52, %p53
      %p55 = scmp.ne.s32.totalorder %s41, %s42
      %p56 = scmp.eq.s32.totalorder %s22, 1
      %p57 = por %p55, %p56
      %p59 = scmp.ne.s32.totalorder %s42, %s58
      %p60 = scmp.eq.s32.totalorder %s22, 0
      %p61 = por %p59, %p60
      %s62 = ssub.s32 %s24, %s31
      %p63 = scmp.eq.s32.totalorder %s62, 0
      %s65 = sadd.s32 %s64, 1
      %s66 = scalar_select %p63, %s64, %s65
      %p69 = pneg %p63
      %p70 = scmp.eq.s32.totalorder %s16, 1
      %p71 = por %p69, %p70
      %p72 = scmp.ne.s32.totalorder %s64, %s67
      %p73 = scmp.eq.s32.totalorder %s16, 0
      %p74 = por %p72, %p73
      %p75 = scmp.ne.s32.totalorder %s64, %s67
      %p76 = scmp.eq.s32.totalorder %s21, 1
      %p77 = por %p75, %p76
      %p78 = scmp.ne.s32.totalorder %s67, %s68
      %p79 = scmp.eq.s32.totalorder %s21, 0
      %p80 = por %p78, %p79
      %p81 = scmp.ne.s32.totalorder %s67, %s68
      %p82 = scmp.eq.s32.totalorder %s22, 1
      %p83 = por %p81, %p82
      %p85 = scmp.ne.s32.totalorder %s68, %s84
      %p86 = scmp.eq.s32.totalorder %s22, 0
      %p87 = por %p85, %p86
      %s88 = ssub.s32 %s24, %s31
      %p89 = scmp.eq.s32.totalorder %s88, 0
      %s91 = sadd.s32 %s90, 1
      %s92 = scalar_select %p89, %s90, %s91
      %p95 = pneg %p89
      %p96 = scmp.eq.s32.totalorder %s16, 1
      %p97 = por %p95, %p96
      %p98 = scmp.ne.s32.totalorder %s90, %s93
      %p99 = scmp.eq.s32.totalorder %s16, 0
      %p100 = por %p98, %p99
      %p101 = scmp.ne.s32.totalorder %s90, %s93
      %p102 = scmp.eq.s32.totalorder %s21, 1
      %p103 = por %p101, %p102
      %p104 = scmp.ne.s32.totalorder %s93, %s94
      %p105 = scmp.eq.s32.totalorder %s21, 0
      %p106 = por %p104, %p105
      %p107 = scmp.ne.s32.totalorder %s93, %s94
      %p108 = scmp.eq.s32.totalorder %s22, 1
      %p109 = por %p107, %p108
      %p111 = scmp.ne.s32.totalorder %s94, %s110
      %p112 = scmp.eq.s32.totalorder %s22, 0
      %p113 = por %p111, %p112
      %s114 = ssub.s32 %s23, %s35
      %s115 = ssub.s32 %s24, %s31
      %s116 = sor.u32 %s114, %s115
      %p117 = scmp.eq.s32.totalorder %s116, 0
      %s119 = sadd.s32 %s118, 1
      %s120 = scalar_select %p117, %s118, %s119
      %p123 = pneg %p117
      %p124 = scmp.eq.s32.totalorder %s16, 1
      %p125 = por %p123, %p124
      %p126 = scmp.ne.s32.totalorder %s118, %s121
      %p127 = scmp.eq.s32.totalorder %s16, 0
      %p128 = por %p126, %p127
      %p129 = scmp.ne.s32.totalorder %s118, %s121
      %p130 = scmp.eq.s32.totalorder %s21, 1
      %p131 = por %p129, %p130
      %p132 = scmp.ne.s32.totalorder %s121, %s122
      %p133 = scmp.eq.s32.totalorder %s21, 0
      %p134 = por %p132, %p133
      %p135 = scmp.ne.s32.totalorder %s121, %s122
      %p136 = scmp.eq.s32.totalorder %s22, 1
      %p137 = por %p135, %p136
      %p139 = scmp.ne.s32.totalorder %s122, %s138
      %p140 = scmp.eq.s32.totalorder %s22, 0
      %p141 = por %p139, %p140
      %p142 = scmp.le.s32.totalorder 1, %s16
      %p143 = scmp.lt.s32.totalorder %s16, 3
      %p144 = pnand %p142, %p143
      %p145 = pneg %p144
      // Predicated region
      $region9: #{tpu_custom_call.1} parent=5 // pred_check
        _
      $region10: #{tpu_custom_call.1} parent=5 // pred_check_branch
        %147 = sbr.rel (%p144) target = $region12
      $region11: #{tpu_custom_call.1} parent=5 // pred_region
        %s148 = ssub.s32 %s16, 1
        // Predicated region
        $region13: #{tpu_custom_call.1} parent=11 // pred_check
          %p149 = pneg %p80
        $region14: #{tpu_custom_call.1} parent=11 // pred_check_branch
          %151 = sbr.rel (%p149) target = $region16
        $region15: #{tpu_custom_call.1} parent=11 // pred_region
          %s153 = ssub.s32 2048, 2048
          %154 = vsyncadd [#allocation6], %s153
          %s155 = smul.addr %s26, 128
          %s156 = scalar_lea.hbm %s1, %s155
          %s157 = sshll.u32 [#allocation5], 4
          %s158 = int_to_ptr.vmem [resolvable:$true] %s157
          %163 = dma.hbm_to_vmem [thread:$0]  %s156, 2048, %s158, [#allocation6], 128, 128, 8
        $region16: #{tpu_custom_call.1} parent=11 // pred_fallthru
          _
        // Predicated region
        $region17: #{tpu_custom_call.1} parent=11 // pred_check
          %p164 = pneg %p106
        $region18: #{tpu_custom_call.1} parent=11 // pred_check_branch
          %166 = sbr.rel (%p164) target = $region20
        $region19: #{tpu_custom_call.1} parent=11 // pred_region
          %p167 = scmp.lt.s32.totalorder %s26, 0
          %s168 = scalar_select %p167, %s26, 0
          %s169 = scalar_lea.vmem %s2, %s168
        $region20: #{tpu_custom_call.1} parent=11 // pred_fallthru
          _
      $region12: #{tpu_custom_call.1} parent=5 // pred_fallthru
        _
      %p170 = scmp.lt.s32.totalorder %s16, 2
      // Predicated region
      $region21: #{tpu_custom_call.1} parent=5 // pred_check
        %p171 = pneg %p170
      $region22: #{tpu_custom_call.1} parent=5 // pred_check_branch
        %173 = sbr.rel (%p171) target = $region24
      $region23: #{tpu_custom_call.1} parent=5 // pred_region
        // Predicated region
        $region25: #{tpu_custom_call.1} parent=23 // pred_check
          %p174 = pneg %p48
        $region26: #{tpu_custom_call.1} parent=23 // pred_check_branch
          %176 = sbr.rel (%p174) target = $region28
        $region27: #{tpu_custom_call.1} parent=23 // pred_region
          %s177 = sand.u32 %s38, 1
          %s178 = scalar_lea.sflag [#allocation3], %s177
          %s179 = sand.u32 %s38, 1
          %s180 = smul.addr %s179, 8
          %s181 = scalar_lea.vmem [#allocation2], %s180
          %s183 = ssub.s32 128, 128
          %184 = vsyncadd %s178, %s183
          %s185 = smul.addr %s23, 128
          %s186 = scalar_lea.hbm %s0, %s185
          %s188 = sshll.u32 %s181, 4
          %s189 = int_to_ptr.vmem [resolvable:$true] %s188
          %191 = dma.hbm_to_vmem [thread:$0]  %s186, 128, %s189, %s178
        $region28: #{tpu_custom_call.1} parent=23 // pred_fallthru
          _
      $region24: #{tpu_custom_call.1} parent=5 // pred_fallthru
        _
      %p192 = scmp.le.s32.totalorder 1, %s16
      %p193 = scmp.lt.s32.totalorder %s16, 3
      %p194 = pnand %p192, %p193
      %p195 = pneg %p194
      // Predicated region
      $region29: #{tpu_custom_call.1} parent=5 // pred_check
        _
      $region30: #{tpu_custom_call.1} parent=5 // pred_check_branch
        %197 = sbr.rel (%p194) target = $region32
      $region31: #{tpu_custom_call.1} parent=5 // pred_region
        %s198 = ssub.s32 %s16, 1
        %s199 = sand.u32 %s41, 1
        %s200 = scalar_lea.sflag [#allocation3], %s199
        %s201 = sand.u32 %s41, 1
        %s202 = smul.addr %s201, 8
        %s203 = scalar_lea.vmem [#allocation2], %s202
        // Predicated region
        $region33: #{tpu_custom_call.1} parent=31 // pred_check
          %p204 = pneg %p54
        $region34: #{tpu_custom_call.1} parent=31 // pred_check_branch
          %206 = sbr.rel (%p204) target = $region36
        $region35: #{tpu_custom_call.1} parent=31 // pred_region
          %207 = dma.done %s200, 128
        $region36: #{tpu_custom_call.1} parent=31 // pred_fallthru
          _
        // Predicated region
        $region37: #{tpu_custom_call.1} parent=31 // pred_check
          %p208 = pneg %p80
        $region38: #{tpu_custom_call.1} parent=31 // pred_check_branch
          %210 = sbr.rel (%p208) target = $region40
        $region39: #{tpu_custom_call.1} parent=31 // pred_region
          %211 = dma.done [#allocation6], 2048
        $region40: #{tpu_custom_call.1} parent=31 // pred_fallthru
          _
        %s212 = sand.u32 %s41, 1
        %s213 = scalar_lea.sflag [#allocation3], %s212
        %s214 = sand.u32 %s41, 1
        %s215 = smul.addr %s214, 8
        %s216 = scalar_lea.vmem [#allocation2], %s215
        %p217 = pneg %p54
        %p218 = pneg %p51
        %p219 = pneg %p80
        %p220 = pneg %p77
        %p221 = scmp.lt.s32.totalorder %s26, 0
        %s222 = scalar_select %p221, %s26, 0
        %s223 = scalar_lea.vmem %s2, %s222
        %p224 = pneg %p106
        %p225 = pneg %p103
        %p226 = pneg %p134
        %p227 = pneg %p131
        %s228 = sand.u32 %s121, 1
        %s229 = scalar_lea.sflag [#allocation4], %s228
        %s230 = sand.u32 %s121, 1
        %s231 = smul.addr %s230, 8
        %s232 = scalar_lea.vmem [#allocation7], %s231
        %p233 = scmp.lt.s32.totalorder %s26, 0
        %s234 = scalar_select %p233, %s26, 0
        %s235 = scalar_lea.vmem %s2, %s234
        %v236 = vld [vmem:[%s203] sm:$0xff]
        %v237 = vld [vmem:[#allocation5] sm:$0xff]
        %v238 = vld [vmem:[#allocation5 + $0x8] sm:$0xff]
        %v239 = vld [vmem:[#allocation5 + $0x10] sm:$0xff]
        %v240 = vld [vmem:[#allocation5 + $0x18] sm:$0xff]
        %v241 = vld [vmem:[#allocation5 + $0x20] sm:$0xff]
        %v242 = vld [vmem:[#allocation5 + $0x28] sm:$0xff]
        %v243 = vld [vmem:[#allocation5 + $0x30] sm:$0xff]
        %v244 = vld [vmem:[#allocation5 + $0x38] sm:$0xff]
        %v245 = vld [vmem:[#allocation5 + $0x40] sm:$0xff]
        %v246 = vld [vmem:[#allocation5 + $0x48] sm:$0xff]
        %v247 = vld [vmem:[#allocation5 + $0x50] sm:$0xff]
        %v248 = vld [vmem:[#allocation5 + $0x58] sm:$0xff]
        %v249 = vld [vmem:[#allocation5 + $0x60] sm:$0xff]
        %v250 = vld [vmem:[#allocation5 + $0x68] sm:$0xff]
        %v251 = vld [vmem:[#allocation5 + $0x70] sm:$0xff]
        %v252 = vld [vmem:[#allocation5 + $0x78] sm:$0xff]
        %v253 = vld [vmem:[%s235] sm:$0x1]
        %v255 = vlaneseq
        %v256 = vshrl.u32 %v255, 7
        %v257 = vsub.s32 0, %v256
        %v258 = vrot.slane %v253, %v257
        %260 = vmatprep.subr.mxu0 0.0
        %261 = vmatpush1.msra.mxu0 %v252
        %262 = vmatprep.subr.mxu0 0.0
        %263 = vmatpush1.msra.mxu0 %v251
        %264 = vmatprep.subr.mxu0 0.0
        %265 = vmatpush1.msra.mxu0 %v250
        %266 = vmatprep.subr.mxu0 0.0
        %267 = vmatpush1.msra.mxu0 %v249
        %268 = vmatprep.subr.mxu0 0.0
        %269 = vmatpush1.msra.mxu0 %v248
        %270 = vmatprep.subr.mxu0 0.0
        %271 = vmatpush1.msra.mxu0 %v247
        %272 = vmatprep.subr.mxu0 0.0
        %273 = vmatpush1.msra.mxu0 %v246
        %274 = vmatprep.subr.mxu0 0.0
        %275 = vmatpush1.msra.mxu0 %v245
        %276 = vmatprep.subr.mxu0 0.0
        %277 = vmatpush1.msra.mxu0 %v244
        %278 = vmatprep.subr.mxu0 0.0
        %279 = vmatpush1.msra.mxu0 %v243
        %280 = vmatprep.subr.mxu0 0.0
        %281 = vmatpush1.msra.mxu0 %v242
        %282 = vmatprep.subr.mxu0 0.0
        %283 = vmatpush1.msra.mxu0 %v241
        %284 = vmatprep.subr.mxu0 0.0
        %285 = vmatpush1.msra.mxu0 %v240
        %286 = vmatprep.subr.mxu0 0.0
        %287 = vmatpush1.msra.mxu0 %v239
        %288 = vmatprep.subr.mxu0 0.0
        %289 = vmatpush1.msra.mxu0 %v238
        %290 = vmatprep.subr.mxu0 0.0
        %291 = vmatpush1.msra.mxu0 %v237
        %292 = vmatprep.subr.mxu0 0.0
        %293 = vmatpush2.msra.mxu0 0.0
        %294 = vmatprep.subr.mxu0 0.0
        %295 = vmatpush2.msra.mxu0 0.0
        %296 = vmatprep.subr.mxu0 0.0
        %297 = vmatpush2.msra.mxu0 0.0
        %298 = vmatprep.subr.mxu0 0.0
        %299 = vmatpush2.msra.mxu0 0.0
        %300 = vmatprep.subr.mxu0 0.0
        %301 = vmatpush2.msra.mxu0 0.0
        %302 = vmatprep.subr.mxu0 0.0
        %303 = vmatpush2.msra.mxu0 0.0
        %304 = vmatprep.subr.mxu0 0.0
        %305 = vmatpush2.msra.mxu0 0.0
        %306 = vmatprep.subr.mxu0 0.0
        %307 = vmatpush2.msra.mxu0 0.0
        %308 = vmatprep.subr.mxu0 0.0
        %309 = vmatpush2.msra.mxu0 0.0
        %310 = vmatprep.subr.mxu0 0.0
        %311 = vmatpush2.msra.mxu0 0.0
        %312 = vmatprep.subr.mxu0 0.0
        %313 = vmatpush2.msra.mxu0 0.0
        %314 = vmatprep.subr.mxu0 0.0
        %315 = vmatpush2.msra.mxu0 0.0
        %316 = vmatprep.subr.mxu0 0.0
        %317 = vmatpush2.msra.mxu0 0.0
        %318 = vmatprep.subr.mxu0 0.0
        %319 = vmatpush2.msra.mxu0 0.0
        %320 = vmatprep.subr.mxu0 0.0
        %321 = vmatpush2.msra.mxu0 0.0
        %322 = vmatprep.subr.mxu0 0.0
        %323 = vmatpush2.msra.mxu0 0.0
        %324 = vmatprep.mubr.f32.mxu0 0.0
        %325 = vmatmul.mubr.f32.gmra.mxu0 %v236
        %v326 = vpop.f32.mrf.mxu0
        %v327 = vadd.f32 %v258, %v326
        %v328 = vpop.f32.mrf.mxu0
        %329 = vdwg.mxu0
        %v330 = vmax.f32 %v327, 0.0
        %331 = vst [vmem:[%s232] sm:$0xff] %v330
        %s332 = sand.u32 %s121, 1
        %s333 = scalar_lea.sflag [#allocation4], %s332
        %s334 = sand.u32 %s121, 1
        %s335 = smul.addr %s334, 8
        %s336 = scalar_lea.vmem [#allocation7], %s335
        // Predicated region
        $region41: #{tpu_custom_call.1} parent=31 // pred_check
          %p337 = pneg %p131
        $region42: #{tpu_custom_call.1} parent=31 // pred_check_branch
          %339 = sbr.rel (%p337) target = $region44
        $region43: #{tpu_custom_call.1} parent=31 // pred_region
          %s341 = ssub.s32 128, 128
          %342 = vsyncadd %s333, %s341
          %s343 = sadd.s32 %s26, %s25
          %s344 = smul.addr %s343, 128
          %s345 = scalar_lea.hbm %s3, %s344
          %s347 = sshll.u32 %s336, 4
          %s348 = int_to_ptr.vmem [resolvable:$true] %s347
          %350 = dma.vmem_to_hbm [thread:$0]  %s348, 128, %s345, %s333
        $region44: #{tpu_custom_call.1} parent=31 // pred_fallthru
          _
      $region32: #{tpu_custom_call.1} parent=5 // pred_fallthru
        _
      %p351 = scmp.le.s32.totalorder 2, %s16
      // Predicated region
      $region45: #{tpu_custom_call.1} parent=5 // pred_check
        %p352 = pneg %p351
      $region46: #{tpu_custom_call.1} parent=5 // pred_check_branch
        %354 = sbr.rel (%p352) target = $region48
      $region47: #{tpu_custom_call.1} parent=5 // pred_region
        %s355 = ssub.s32 %s16, 2
        // Predicated region
        $region49: #{tpu_custom_call.1} parent=47 // pred_check
          %p356 = pneg %p137
        $region50: #{tpu_custom_call.1} parent=47 // pred_check_branch
          %358 = sbr.rel (%p356) target = $region52
        $region51: #{tpu_custom_call.1} parent=47 // pred_region
          %s359 = sand.u32 %s122, 1
          %s360 = scalar_lea.sflag [#allocation4], %s359
          %s361 = sand.u32 %s122, 1
          %s362 = smul.addr %s361, 8
          %s363 = scalar_lea.vmem [#allocation7], %s362
          %364 = dma.done %s360, 128
        $region52: #{tpu_custom_call.1} parent=47 // pred_fallthru
          _
      $region48: #{tpu_custom_call.1} parent=5 // pred_fallthru
        _
    $region6: #{tpu_custom_call.1} parent=1 // loop_footer
      %s20 = sadd.s32 1, %s16
    $region7: #{tpu_custom_call.1} parent=1 // loop_footer_branch
      %15 = sbr.rel target = $region3
    $region8: #{tpu_custom_call.1} parent=1 // loop_exit
      _
    %365 = vsyncpa [#allocation3], 1
    %s366 = scalar_lea.sflag [#allocation3], 1
    %367 = vsyncpa %s366, 1
    %368 = vsyncpa [#allocation6], 1
    %369 = vsyncpa [#allocation4], 1
    %s370 = scalar_lea.sflag [#allocation4], 1
    %371 = vsyncpa %s370, 1

// kernel: tpu_custom_call.1
$region0: #{tpu_custom_call.1}
  #allocation0 [shape = 'u32[]', space=smem, size = 0x4, offset = 0x4, fixed_abs, tag = 'smem constant byte address 0x4 - core index']
  #allocation1 [shape = 'u32[144,128]{1,0:T(1,128)}', space=vmem, size = 0x12000, scoped, tag = 'internal scratch']
  %s0 = inlined_call_operand.hbm [shape: f32[16,128], index: 0, kind: input, shape index: {}]
  %s1 = inlined_call_operand.hbm [shape: f32[128,128], index: 1, kind: input, shape index: {}]
  %s2 = inlined_call_operand.vmem [shape: f32[1,128], index: 2, kind: input, shape index: {}]
  %s3 = inlined_call_operand.hbm [shape: f32[16,128], index: 3, kind: output, shape index: {}]
  %s4 = sld [smem:[#allocation0]]
  $region53: #{tpu_custom_call.1} parent=0
    _
  %s6 = ssub.s32 1, %s4
  %s7 = scalar_select 0, %s6, %s4
  $region1: #{tpu_custom_call.1} parent=0
    #allocation2 [shape = 'u8[8192]{0}', space=vmem, size = 0x2000, scoped, tag = 'input window, operand 0']
    #allocation3 [shape = 's32[2]{0}', space=sflag, size = 0x8, scoped, tag = 'scoped memory for tpu_custom_call.1']
    #allocation4 [shape = 's32[2]{0}', space=sflag, size = 0x8, scoped, tag = 'scoped memory for tpu_custom_call.1']
    #allocation5 [shape = 'u8[65536]{0}', space=vmem, size = 0x10000, scoped, tag = 'input window, operand 1, single buffered']
    #allocation6 [shape = 's32[1]{0}', space=sflag, size = 0x4, scoped, tag = 'scoped memory for tpu_custom_call.1']
    #allocation7 [shape = 'u8[8192]{0}', space=vmem, size = 0x2000, scoped, tag = 'output window, operand 0']
    %8 = vsyncpa [#allocation3], 0
    %s9 = scalar_lea.sflag [#allocation3], 1
    %10 = vsyncpa %s9, 0
    %11 = vsyncpa [#allocation6], 0
    %12 = vsyncpa [#allocation4], 0
    %s13 = scalar_lea.sflag [#allocation4], 1
    %14 = vsyncpa %s13, 0
    loop: start=0, step=1, limit=4
    $region2: #{tpu_custom_call.1} parent=1 // loop_pre_header
      _
    $region3: #{tpu_custom_call.1} parent=1 // loop_header
      %s16 = sphi 0, %s20
      %p17 = scmp.ge.s32.totalorder %s16, 4
      %s23 = sphi 0, %s35
      %s24 = sphi 0, %s31
      %s25 = sphi 0, %s23
      %s26 = sphi 0, %s24
      %s27 = sphi 0, %s25
      %s28 = sphi 0, %s26
      %s38 = sphi 0, %s40
      %s41 = sphi 0, %s38
      %s42 = sphi 0, %s41
      %s58 = sphi 0, %s42
      %s64 = sphi 0, %s66
      %s67 = sphi 0, %s64
      %s68 = sphi 0, %s67
      %s84 = sphi 0, %s68
      %s90 = sphi 0, %s92
      %s93 = sphi 0, %s90
      %s94 = sphi 0, %s93
      %s110 = sphi 0, %s94
      %s118 = sphi 0, %s120
      %s121 = sphi 0, %s118
      %s122 = sphi 0, %s121
      %s138 = sphi 0, %s122
    $region4: #{tpu_custom_call.1} parent=1 // loop_header_branch
      %19 = sbr.rel (%p17) target = $region8
    $region5: #{tpu_custom_call.1} parent=1 // loop_body
      %s21 = ssub.s32 %s16, 1
      %s22 = ssub.s32 %s16, 2
      %s29 = sadd.s32 1, %s24
      %p30 = scmp.ge.s32.totalorder %s29, 1
      %s31 = scalar_select %p30, 0, %s29
      %s32 = sadd.s32 1, %s23
      %s33 = scalar_select %p30, %s32, %s23
      %p34 = scmp.ge.s32.totalorder %s33, 2
      %s35 = scalar_select %p34, 0, %s33
      %s36 = ssub.s32 %s23, %s35
      %p37 = scmp.eq.s32.totalorder %s36, 0
      %s39 = sadd.s32 %s38, 1
      %s40 = scalar_select %p37, %s38, %s39
      %p43 = pneg %p37
      %p44 = scmp.eq.s32.totalorder %s16, 1
      %p45 = por %p43, %p44
      %p46 = scmp.ne.s32.totalorder %s38, %s41
      %p47 = scmp.eq.s32.totalorder %s16, 0
      %p48 = por %p46, %p47
      %p49 = scmp.ne.s32.totalorder %s38, %s41
      %p50 = scmp.eq.s32.totalorder %s21, 1
      %p51 = por %p49, %p50
      %p52 = scmp.ne.s32.totalorder %s41, %s42
      %p53 = scmp.eq.s32.totalorder %s21, 0
      %p54 = por %p52, %p53
      %p55 = scmp.ne.s32.totalorder %s41, %s42
      %p56 = scmp.eq.s32.totalorder %s22, 1
      %p57 = por %p55, %p56
      %p59 = scmp.ne.s32.totalorder %s42, %s58
      %p60 = scmp.eq.s32.totalorder %s22, 0
      %p61 = por %p59, %p60
      %s62 = ssub.s32 %s24, %s31
      %p63 = scmp.eq.s32.totalorder %s62, 0
      %s65 = sadd.s32 %s64, 1
      %s66 = scalar_select %p63, %s64, %s65
      %p69 = pneg %p63
      %p70 = scmp.eq.s32.totalorder %s16, 1
      %p71 = por %p69, %p70
      %p72 = scmp.ne.s32.totalorder %s64, %s67
      %p73 = scmp.eq.s32.totalorder %s16, 0
      %p74 = por %p72, %p73
      %p75 = scmp.ne.s32.totalorder %s64, %s67
      %p76 = scmp.eq.s32.totalorder %s21, 1
      %p77 = por %p75, %p76
      %p78 = scmp.ne.s32.totalorder %s67, %s68
      %p79 = scmp.eq.s32.totalorder %s21, 0
      %p80 = por %p78, %p79
      %p81 = scmp.ne.s32.totalorder %s67, %s68
      %p82 = scmp.eq.s32.totalorder %s22, 1
      %p83 = por %p81, %p82
      %p85 = scmp.ne.s32.totalorder %s68, %s84
      %p86 = scmp.eq.s32.totalorder %s22, 0
      %p87 = por %p85, %p86
      %s88 = ssub.s32 %s24, %s31
      %p89 = scmp.eq.s32.totalorder %s88, 0
      %s91 = sadd.s32 %s90, 1
      %s92 = scalar_select %p89, %s90, %s91
      %p95 = pneg %p89
      %p96 = scmp.eq.s32.totalorder %s16, 1
      %p97 = por %p95, %p96
      %p98 = scmp.ne.s32.totalorder %s90, %s93
      %p99 = scmp.eq.s32.totalorder %s16, 0
      %p100 = por %p98, %p99
      %p101 = scmp.ne.s32.totalorder %s90, %s93
      %p102 = scmp.eq.s32.totalorder %s21, 1
      %p103 = por %p101, %p102
      %p104 = scmp.ne.s32.totalorder %s93, %s94
      %p105 = scmp.eq.s32.totalorder %s21, 0
      %p106 = por %p104, %p105
      %p107 = scmp.ne.s32.totalorder %s93, %s94
      %p108 = scmp.eq.s32.totalorder %s22, 1
      %p109 = por %p107, %p108
      %p111 = scmp.ne.s32.totalorder %s94, %s110
      %p112 = scmp.eq.s32.totalorder %s22, 0
      %p113 = por %p111, %p112
      %s114 = ssub.s32 %s23, %s35
      %s115 = ssub.s32 %s24, %s31
      %s116 = sor.u32 %s114, %s115
      %p117 = scmp.eq.s32.totalorder %s116, 0
      %s119 = sadd.s32 %s118, 1
      %s120 = scalar_select %p117, %s118, %s119
      %p123 = pneg %p117
      %p124 = scmp.eq.s32.totalorder %s16, 1
      %p125 = por %p123, %p124
      %p126 = scmp.ne.s32.totalorder %s118, %s121
      %p127 = scmp.eq.s32.totalorder %s16, 0
      %p128 = por %p126, %p127
      %p129 = scmp.ne.s32.totalorder %s118, %s121
      %p130 = scmp.eq.s32.totalorder %s21, 1
      %p131 = por %p129, %p130
      %p132 = scmp.ne.s32.totalorder %s121, %s122
      %p133 = scmp.eq.s32.totalorder %s21, 0
      %p134 = por %p132, %p133
      %p135 = scmp.ne.s32.totalorder %s121, %s122
      %p136 = scmp.eq.s32.totalorder %s22, 1
      %p137 = por %p135, %p136
      %p139 = scmp.ne.s32.totalorder %s122, %s138
      %p140 = scmp.eq.s32.totalorder %s22, 0
      %p141 = por %p139, %p140
      %p142 = scmp.le.s32.totalorder 1, %s16
      %p143 = scmp.lt.s32.totalorder %s16, 3
      %p144 = pnand %p142, %p143
      %p145 = pneg %p144
      // Predicated region
      $region9: #{tpu_custom_call.1} parent=5 // pred_check
        _
      $region10: #{tpu_custom_call.1} parent=5 // pred_check_branch
        %147 = sbr.rel (%p144) target = $region12
      $region11: #{tpu_custom_call.1} parent=5 // pred_region
        %s148 = ssub.s32 %s16, 1
        // Predicated region
        $region13: #{tpu_custom_call.1} parent=11 // pred_check
          %p149 = pneg %p80
        $region14: #{tpu_custom_call.1} parent=11 // pred_check_branch
          %151 = sbr.rel (%p149) target = $region16
        $region15: #{tpu_custom_call.1} parent=11 // pred_region
          %s153 = ssub.s32 2048, 2048
          %154 = vsyncadd [#allocation6], %s153
          %s155 = smul.addr %s26, 128
          %s156 = scalar_lea.hbm %s1, %s155
          %s157 = sshll.u32 [#allocation5], 4
          %s158 = int_to_ptr.vmem [resolvable:$true] %s157
          %163 = dma.hbm_to_vmem [thread:$0]  %s156, 2048, %s158, [#allocation6], 128, 128, 8
        $region16: #{tpu_custom_call.1} parent=11 // pred_fallthru
          _
        // Predicated region
        $region17: #{tpu_custom_call.1} parent=11 // pred_check
          %p164 = pneg %p106
        $region18: #{tpu_custom_call.1} parent=11 // pred_check_branch
          %166 = sbr.rel (%p164) target = $region20
        $region19: #{tpu_custom_call.1} parent=11 // pred_region
          %p167 = scmp.lt.s32.totalorder %s26, 0
          %s168 = scalar_select %p167, %s26, 0
          %s169 = scalar_lea.vmem %s2, %s168
        $region20: #{tpu_custom_call.1} parent=11 // pred_fallthru
          _
      $region12: #{tpu_custom_call.1} parent=5 // pred_fallthru
        _
      %p170 = scmp.lt.s32.totalorder %s16, 2
      // Predicated region
      $region21: #{tpu_custom_call.1} parent=5 // pred_check
        %p171 = pneg %p170
      $region22: #{tpu_custom_call.1} parent=5 // pred_check_branch
        %173 = sbr.rel (%p171) target = $region24
      $region23: #{tpu_custom_call.1} parent=5 // pred_region
        // Predicated region
        $region25: #{tpu_custom_call.1} parent=23 // pred_check
          %p174 = pneg %p48
        $region26: #{tpu_custom_call.1} parent=23 // pred_check_branch
          %176 = sbr.rel (%p174) target = $region28
        $region27: #{tpu_custom_call.1} parent=23 // pred_region
          %s177 = sand.u32 %s38, 1
          %s178 = scalar_lea.sflag [#allocation3], %s177
          %s179 = sand.u32 %s38, 1
          %s180 = smul.addr %s179, 8
          %s181 = scalar_lea.vmem [#allocation2], %s180
          %s183 = ssub.s32 128, 128
          %184 = vsyncadd %s178, %s183
          %s185 = smul.addr %s23, 128
          %s186 = scalar_lea.hbm %s0, %s185
          %s188 = sshll.u32 %s181, 4
          %s189 = int_to_ptr.vmem [resolvable:$true] %s188
          %191 = dma.hbm_to_vmem [thread:$0]  %s186, 128, %s189, %s178
        $region28: #{tpu_custom_call.1} parent=23 // pred_fallthru
          _
      $region24: #{tpu_custom_call.1} parent=5 // pred_fallthru
        _
      %p192 = scmp.le.s32.totalorder 1, %s16
      %p193 = scmp.lt.s32.totalorder %s16, 3
      %p194 = pnand %p192, %p193
      %p195 = pneg %p194
      // Predicated region
      $region29: #{tpu_custom_call.1} parent=5 // pred_check
        _
      $region30: #{tpu_custom_call.1} parent=5 // pred_check_branch
        %197 = sbr.rel (%p194) target = $region32
      $region31: #{tpu_custom_call.1} parent=5 // pred_region
        %s198 = ssub.s32 %s16, 1
        %s199 = sand.u32 %s41, 1
        %s200 = scalar_lea.sflag [#allocation3], %s199
        %s201 = sand.u32 %s41, 1
        %s202 = smul.addr %s201, 8
        %s203 = scalar_lea.vmem [#allocation2], %s202
        // Predicated region
        $region33: #{tpu_custom_call.1} parent=31 // pred_check
          %p204 = pneg %p54
        $region34: #{tpu_custom_call.1} parent=31 // pred_check_branch
          %206 = sbr.rel (%p204) target = $region36
        $region35: #{tpu_custom_call.1} parent=31 // pred_region
          %207 = dma.done %s200, 128
        $region36: #{tpu_custom_call.1} parent=31 // pred_fallthru
          _
        // Predicated region
        $region37: #{tpu_custom_call.1} parent=31 // pred_check
          %p208 = pneg %p80
        $region38: #{tpu_custom_call.1} parent=31 // pred_check_branch
          %210 = sbr.rel (%p208) target = $region40
        $region39: #{tpu_custom_call.1} parent=31 // pred_region
          %211 = dma.done [#allocation6], 2048
        $region40: #{tpu_custom_call.1} parent=31 // pred_fallthru
          _
        %s212 = sand.u32 %s41, 1
        %s213 = scalar_lea.sflag [#allocation3], %s212
        %s214 = sand.u32 %s41, 1
        %s215 = smul.addr %s214, 8
        %s216 = scalar_lea.vmem [#allocation2], %s215
        %p217 = pneg %p54
        %p218 = pneg %p51
        %p219 = pneg %p80
        %p220 = pneg %p77
        %p221 = scmp.lt.s32.totalorder %s26, 0
        %s222 = scalar_select %p221, %s26, 0
        %s223 = scalar_lea.vmem %s2, %s222
        %p224 = pneg %p106
        %p225 = pneg %p103
        %p226 = pneg %p134
        %p227 = pneg %p131
        %s228 = sand.u32 %s121, 1
        %s229 = scalar_lea.sflag [#allocation4], %s228
        %s230 = sand.u32 %s121, 1
        %s231 = smul.addr %s230, 8
        %s232 = scalar_lea.vmem [#allocation7], %s231
        %p233 = scmp.lt.s32.totalorder %s26, 0
        %s234 = scalar_select %p233, %s26, 0
        %s235 = scalar_lea.vmem %s2, %s234
        %v236 = vld [vmem:[%s203] sm:$0xff]
        %v237 = vld [vmem:[#allocation5] sm:$0xff]
        %v238 = vld [vmem:[#allocation5 + $0x8] sm:$0xff]
        %v239 = vld [vmem:[#allocation5 + $0x10] sm:$0xff]
        %v240 = vld [vmem:[#allocation5 + $0x18] sm:$0xff]
        %v241 = vld [vmem:[#allocation5 + $0x20] sm:$0xff]
        %v242 = vld [vmem:[#allocation5 + $0x28] sm:$0xff]
        %v243 = vld [vmem:[#allocation5 + $0x30] sm:$0xff]
        %v244 = vld [vmem:[#allocation5 + $0x38] sm:$0xff]
        %v245 = vld [vmem:[#allocation5 + $0x40] sm:$0xff]
        %v246 = vld [vmem:[#allocation5 + $0x48] sm:$0xff]
        %v247 = vld [vmem:[#allocation5 + $0x50] sm:$0xff]
        %v248 = vld [vmem:[#allocation5 + $0x58] sm:$0xff]
        %v249 = vld [vmem:[#allocation5 + $0x60] sm:$0xff]
        %v250 = vld [vmem:[#allocation5 + $0x68] sm:$0xff]
        %v251 = vld [vmem:[#allocation5 + $0x70] sm:$0xff]
        %v252 = vld [vmem:[#allocation5 + $0x78] sm:$0xff]
        %v253 = vld [vmem:[%s235] sm:$0x1]
        %v255 = vlaneseq
        %v256 = vshrl.u32 %v255, 7
        %v257 = vsub.s32 0, %v256
        %v258 = vrot.slane %v253, %v257
        %260 = vmatprep.subr.mxu0 0.0
        %261 = vmatpush1.msra.mxu0 %v252
        %262 = vmatprep.subr.mxu0 0.0
        %263 = vmatpush1.msra.mxu0 %v251
        %264 = vmatprep.subr.mxu0 0.0
        %265 = vmatpush1.msra.mxu0 %v250
        %266 = vmatprep.subr.mxu0 0.0
        %267 = vmatpush1.msra.mxu0 %v249
        %268 = vmatprep.subr.mxu0 0.0
        %269 = vmatpush1.msra.mxu0 %v248
        %270 = vmatprep.subr.mxu0 0.0
        %271 = vmatpush1.msra.mxu0 %v247
        %272 = vmatprep.subr.mxu0 0.0
        %273 = vmatpush1.msra.mxu0 %v246
        %274 = vmatprep.subr.mxu0 0.0
        %275 = vmatpush1.msra.mxu0 %v245
        %276 = vmatprep.subr.mxu0 0.0
        %277 = vmatpush1.msra.mxu0 %v244
        %278 = vmatprep.subr.mxu0 0.0
        %279 = vmatpush1.msra.mxu0 %v243
        %280 = vmatprep.subr.mxu0 0.0
        %281 = vmatpush1.msra.mxu0 %v242
        %282 = vmatprep.subr.mxu0 0.0
        %283 = vmatpush1.msra.mxu0 %v241
        %284 = vmatprep.subr.mxu0 0.0
        %285 = vmatpush1.msra.mxu0 %v240
        %286 = vmatprep.subr.mxu0 0.0
        %287 = vmatpush1.msra.mxu0 %v239
        %288 = vmatprep.subr.mxu0 0.0
        %289 = vmatpush1.msra.mxu0 %v238
        %290 = vmatprep.subr.mxu0 0.0
        %291 = vmatpush1.msra.mxu0 %v237
        %292 = vmatprep.subr.mxu0 0.0
        %293 = vmatpush2.msra.mxu0 0.0
        %294 = vmatprep.subr.mxu0 0.0
        %295 = vmatpush2.msra.mxu0 0.0
        %296 = vmatprep.subr.mxu0 0.0
        %297 = vmatpush2.msra.mxu0 0.0
        %298 = vmatprep.subr.mxu0 0.0
        %299 = vmatpush2.msra.mxu0 0.0
        %300 = vmatprep.subr.mxu0 0.0
        %301 = vmatpush2.msra.mxu0 0.0
        %302 = vmatprep.subr.mxu0 0.0
        %303 = vmatpush2.msra.mxu0 0.0
        %304 = vmatprep.subr.mxu0 0.0
        %305 = vmatpush2.msra.mxu0 0.0
        %306 = vmatprep.subr.mxu0 0.0
        %307 = vmatpush2.msra.mxu0 0.0
        %308 = vmatprep.subr.mxu0 0.0
        %309 = vmatpush2.msra.mxu0 0.0
        %310 = vmatprep.subr.mxu0 0.0
        %311 = vmatpush2.msra.mxu0 0.0
        %312 = vmatprep.subr.mxu0 0.0
        %313 = vmatpush2.msra.mxu0 0.0
        %314 = vmatprep.subr.mxu0 0.0
        %315 = vmatpush2.msra.mxu0 0.0
        %316 = vmatprep.subr.mxu0 0.0
        %317 = vmatpush2.msra.mxu0 0.0
        %318 = vmatprep.subr.mxu0 0.0
        %319 = vmatpush2.msra.mxu0 0.0
        %320 = vmatprep.subr.mxu0 0.0
        %321 = vmatpush2.msra.mxu0 0.0
        %322 = vmatprep.subr.mxu0 0.0
        %323 = vmatpush2.msra.mxu0 0.0
        %324 = vmatprep.mubr.f32.mxu0 0.0
        %325 = vmatmul.mubr.f32.gmra.mxu0 %v236
        %v326 = vpop.f32.mrf.mxu0
        %v327 = vadd.f32 %v258, %v326
        %v328 = vpop.f32.mrf.mxu0
        %329 = vdwg.mxu0
        %v330 = vmax.f32 %v327, 0.0
        %331 = vst [vmem:[%s232] sm:$0xff] %v330
        %s332 = sand.u32 %s121, 1
        %s333 = scalar_lea.sflag [#allocation4], %s332
        %s334 = sand.u32 %s121, 1
        %s335 = smul.addr %s334, 8
        %s336 = scalar_lea.vmem [#allocation7], %s335
        // Predicated region
        $region41: #{tpu_custom_call.1} parent=31 // pred_check
          %p337 = pneg %p131
        $region42: #{tpu_custom_call.1} parent=31 // pred_check_branch
          %339 = sbr.rel (%p337) target = $region44
        $region43: #{tpu_custom_call.1} parent=31 // pred_region
          %s341 = ssub.s32 128, 128
          %342 = vsyncadd %s333, %s341
          %s343 = sadd.s32 %s26, %s25
          %s344 = smul.addr %s343, 128
          %s345 = scalar_lea.hbm %s3, %s344
          %s347 = sshll.u32 %s336, 4
          %s348 = int_to_ptr.vmem [resolvable:$true] %s347
          %350 = dma.vmem_to_hbm [thread:$0]  %s348, 128, %s345, %s333
        $region44: #{tpu_custom_call.1} parent=31 // pred_fallthru
          _
      $region32: #{tpu_custom_call.1} parent=5 // pred_fallthru
        _
      %p351 = scmp.le.s32.totalorder 2, %s16
      // Predicated region
      $region45: #{tpu_custom_call.1} parent=5 // pred_check
        %p352 = pneg %p351
      $region46: #{tpu_custom_call.1} parent=5 // pred_check_branch
        %354 = sbr.rel (%p352) target = $region48
      $region47: #{tpu_custom_call.1} parent=5 // pred_region
        %s355 = ssub.s32 %s16, 2
        // Predicated region
        $region49: #{tpu_custom_call.1} parent=47 // pred_check
          %p356 = pneg %p137
        $region50: #{tpu_custom_call.1} parent=47 // pred_check_branch
          %358 = sbr.rel (%p356) target = $region52
        $region51: #{tpu_custom_call.1} parent=47 // pred_region
          %s359 = sand.u32 %s122, 1
          %s360 = scalar_lea.sflag [#allocation4], %s359
          %s361 = sand.u32 %s122, 1
          %s362 = smul.addr %s361, 8
          %s363 = scalar_lea.vmem [#allocation7], %s362
          %364 = dma.done %s360, 128
        $region52: #{tpu_custom_call.1} parent=47 // pred_fallthru
          _
      $region48: #{tpu_custom_call.1} parent=5 // pred_fallthru
        _
    $region6: #{tpu_custom_call.1} parent=1 // loop_footer
      %s20 = sadd.s32 1, %s16
    $region7: #{tpu_custom_call.1} parent=1 // loop_footer_branch
      %15 = sbr.rel target = $region3
    $region8: #{tpu_custom_call.1} parent=1 // loop_exit
      _
    %365 = vsyncpa [#allocation3], 1
    %s366 = scalar_lea.sflag [#allocation3], 1
    %367 = vsyncpa %s366, 1
    %368 = vsyncpa [#allocation6], 1
    %369 = vsyncpa [#allocation4], 1
    %s370 = scalar_lea.sflag [#allocation4], 1
    %371 = vsyncpa %s370, 1

</llo_original>
